<compile_context>
chip_gen: v7x
topology: tpu7x:2x2x1
jax: 0.10.0
libtpu: 0.0.40
codegen_flags: <defaults>
</compile_context>

<pallas_src>
import functools

import jax
import jax.numpy as jnp
from jax.experimental import pallas as pl
from jax.experimental.pallas import tpu as pltpu

_NORM_EPS = 1e-12   # F.normalize default eps
_VAR_EPS = 1e-6     # compute_var eps
_VMEM_LIMIT = 32 * 1024 * 1024


def _l2_normalize(x):
    # one reciprocal per row (EUP) + cheap VPU multiplies instead of D divides
    nrm = jnp.sqrt(jnp.sum(x * x, axis=-1, keepdims=True))
    inv = pl.reciprocal(jnp.maximum(nrm, _NORM_EPS), approx=False)
    return x * inv


def _col_std(zs, zss, n):
    # unbiased variance from column sum / sum-of-squares (matches compute_var).
    # NOTE: n == 1 divides by zero, exactly like the PyTorch reference.
    var = zss / (n - 1.0) - (zs * zs) / (n * (n - 1.0))
    return jnp.sqrt(var + _VAR_EPS)


def _row_mask(tile_idx, tile_rows, n_valid):
    rows = jax.lax.broadcasted_iota(jnp.int32, (tile_rows, 1), 0) + tile_idx * tile_rows
    return rows < n_valid


def _pick_row_tile(n_rows, d, n_streams, itemsize, max_rows=None):
    """Largest sublane-aligned row tile that keeps double-buffered inputs small."""
    if max_rows is None:
        budget = 8 * 1024 * 1024          # fits v5e's 16 MiB scoped-VMEM default
        per_row = max(1, n_streams * 2 * d * max(int(itemsize), 4))
        max_rows = max(8, budget // per_row)
    t = min(n_rows, 512, max_rows)
    if t < n_rows:
        t = max(8, (t // 8) * 8)          # multiple of 8 (sublane) when tiling
    return int(t)


# ----------------------------------------------------------------------------
# Frame path: fused byol(q2, k2) + variance stats of q2 + std mean of k2
# ----------------------------------------------------------------------------
def _frame_kernel(q2_ref, k2_ref,
                  byol_sum_ref, stdloss_q2_ref, stdmean_q2_ref, stdmean_k2_ref,
                  q2_sum, q2_ss, k2_sum, k2_ss, dot_acc,
                  *, n_rows, tile_rows):
    i = pl.program_id(0)
    nsteps = pl.num_programs(0)

    @pl.when(i == 0)
    def _init():
        q2_sum[...] = jnp.zeros_like(q2_sum)
        q2_ss[...] = jnp.zeros_like(q2_ss)
        k2_sum[...] = jnp.zeros_like(k2_sum)
        k2_ss[...] = jnp.zeros_like(k2_ss)
        dot_acc[...] = jnp.zeros_like(dot_acc)

    mask = _row_mask(i, tile_rows, n_rows)                       # (T, 1)

    q2 = q2_ref[...].astype(jnp.float32)
    k2 = k2_ref[...].astype(jnp.float32)
    q2n = jnp.where(mask, _l2_normalize(q2), 0.0)                # masked rows -> 0
    k2n = jnp.where(mask, _l2_normalize(k2), 0.0)

    q2_sum[...] += jnp.sum(q2n, axis=0, keepdims=True)
    q2_ss[...] += jnp.sum(q2n * q2n, axis=0, keepdims=True)
    k2_sum[...] += jnp.sum(k2n, axis=0, keepdims=True)
    k2_ss[...] += jnp.sum(k2n * k2n, axis=0, keepdims=True)

    inner = jnp.sum(q2n * k2n, axis=-1, keepdims=True)           # (T, 1), 0 on pad rows
    dot_acc[...] += jnp.sum(inner, axis=0, keepdims=True)

    @pl.when(i == nsteps - 1)
    def _finalize():
        n = jnp.float32(n_rows)
        byol_sum_ref[...] = 2.0 * n - 2.0 * dot_acc[...]
        std_q2 = _col_std(q2_sum[...], q2_ss[...], n)            # (1, D)
        stdloss_q2_ref[...] = jnp.mean(jnp.maximum(1.0 - std_q2, 0.0),
                                       axis=-1, keepdims=True)
        stdmean_q2_ref[...] = jnp.mean(std_q2, axis=-1, keepdims=True)
        std_k2 = _col_std(k2_sum[...], k2_ss[...], n)
        stdmean_k2_ref[...] = jnp.mean(std_k2, axis=-1, keepdims=True)


def _frame_pass(q2, k2, max_tile_rows=None):
    n, d = q2.shape
    tn = _pick_row_tile(n, d, n_streams=2,
                        itemsize=jnp.dtype(q2.dtype).itemsize,
                        max_rows=max_tile_rows)
    grid = (pl.cdiv(n, tn),)
    kernel = functools.partial(_frame_kernel, n_rows=n, tile_rows=tn)
    scalar_shape = jax.ShapeDtypeStruct((1, 1), jnp.float32)
    scalar_spec = pl.BlockSpec((1, 1), lambda i: (0, 0))
    outs = pl.pallas_call(
        kernel,
        out_shape=(scalar_shape,) * 4,
        grid=grid,
        in_specs=[
            pl.BlockSpec((tn, d), lambda i: (i, 0)),
            pl.BlockSpec((tn, d), lambda i: (i, 0)),
        ],
        out_specs=(scalar_spec,) * 4,
        scratch_shapes=[
            pltpu.VMEM((1, d), jnp.float32),   # q2 column sums
            pltpu.VMEM((1, d), jnp.float32),   # q2 column sum of squares
            pltpu.VMEM((1, d), jnp.float32),   # k2 column sums
            pltpu.VMEM((1, d), jnp.float32),   # k2 column sum of squares
            pltpu.VMEM((1, 1), jnp.float32),   # cosine dot accumulator
        ],
        compiler_params=pltpu.CompilerParams(
            dimension_semantics=("arbitrary",),
            vmem_limit_bytes=_VMEM_LIMIT),
    )(q2, k2)
    byol_sum, stdloss_q2, stdmean_q2, stdmean_k2 = outs
    return byol_sum[0, 0], stdloss_q2[0, 0], stdmean_q2[0, 0], stdmean_k2[0, 0]


# ----------------------------------------------------------------------------
# Cls path: fused sum_{i>=1} byol(q1_chunk_i, k1) + variance stats of q1 +
#           std mean of k1.  Grid = (B tiles, ncrops), crop axis innermost so
#           the k1 tile (and its normalization, cached in VMEM) stays resident.
# ----------------------------------------------------------------------------
def _cls_kernel(q1_ref, k1_ref,
                lcls_sum_ref, stdloss_q1_ref, stdmean_q1_ref, stdmean_k1_ref,
                q1_sum, q1_ss, k1_sum, k1_ss, dot_acc, k1n_buf,
                *, b_rows, ncrops, tile_rows):
    j = pl.program_id(0)          # B-row tile (outer)
    i = pl.program_id(1)          # crop index (inner)
    nb = pl.num_programs(0)
    nc = pl.num_programs(1)

    @pl.when(jnp.logical_and(j == 0, i == 0))
    def _init():
        q1_sum[...] = jnp.zeros_like(q1_sum)
        q1_ss[...] = jnp.zeros_like(q1_ss)
        k1_sum[...] = jnp.zeros_like(k1_sum)
        k1_ss[...] = jnp.zeros_like(k1_ss)
        dot_acc[...] = jnp.zeros_like(dot_acc)

    mask = _row_mask(j, tile_rows, b_rows)                       # (T, 1)

    @pl.when(i == 0)
    def _prep_k1():
        # normalize k1 tile once per B-tile; cached for all crops i > 0
        k1 = k1_ref[...].astype(jnp.float32)
        k1n = jnp.where(mask, _l2_normalize(k1), 0.0)
        k1n_buf[...] = k1n
        k1_sum[...] += jnp.sum(k1n, axis=0, keepdims=True)
        k1_ss[...] += jnp.sum(k1n * k1n, axis=0, keepdims=True)

    q1 = q1_ref[...].astype(jnp.float32)
    q1n = jnp.where(mask, _l2_normalize(q1), 0.0)
    q1_sum[...] += jnp.sum(q1n, axis=0, keepdims=True)
    q1_ss[...] += jnp.sum(q1n * q1n, axis=0, keepdims=True)

    @pl.when(i > 0)
    def _cosine():
        inner = jnp.sum(q1n * k1n_buf[...], axis=-1, keepdims=True)   # (T, 1)
        dot_acc[...] += jnp.sum(inner, axis=0, keepdims=True)

    @pl.when(jnp.logical_and(j == nb - 1, i == nc - 1))
    def _finalize():
        nq = jnp.float32(ncrops * b_rows)
        nk = jnp.float32(b_rows)
        std_q1 = _col_std(q1_sum[...], q1_ss[...], nq)
        stdloss_q1_ref[...] = jnp.mean(jnp.maximum(1.0 - std_q1, 0.0),
                                       axis=-1, keepdims=True)
        stdmean_q1_ref[...] = jnp.mean(std_q1, axis=-1, keepdims=True)
        std_k1 = _col_std(k1_sum[...], k1_ss[...], nk)
        stdmean_k1_ref[...] = jnp.mean(std_k1, axis=-1, keepdims=True)
        lcls_sum_ref[...] = (2.0 * jnp.float32((ncrops - 1) * b_rows)
                             - 2.0 * dot_acc[...])


def _cls_pass(q1r, k1, max_tile_rows=None):
    ncrops, b_rows, d = q1r.shape
    tb = _pick_row_tile(b_rows, d, n_streams=2,
                        itemsize=jnp.dtype(q1r.dtype).itemsize,
                        max_rows=max_tile_rows)
    grid = (pl.cdiv(b_rows, tb), ncrops)     # crop axis innermost -> k1 resident
    kernel = functools.partial(_cls_kernel, b_rows=b_rows, ncrops=ncrops,
                               tile_rows=tb)
    scalar_shape = jax.ShapeDtypeStruct((1, 1), jnp.float32)
    scalar_spec = pl.BlockSpec((1, 1), lambda j, i: (0, 0))
    outs = pl.pallas_call(
        kernel,
        out_shape=(scalar_shape,) * 4,
        grid=grid,
        in_specs=[
            pl.BlockSpec((None, tb, d), lambda j, i: (i, j, 0)),   # q1 (crop, rows)
            pl.BlockSpec((tb, d), lambda j, i: (j, 0)),            # k1 (rows), const in i
        ],
        out_specs=(scalar_spec,) * 4,
        scratch_shapes=[
            pltpu.VMEM((1, d), jnp.float32),    # q1 column sums
            pltpu.VMEM((1, d), jnp.float32),    # q1 column sum of squares
            pltpu.VMEM((1, d), jnp.float32),    # k1 column sums
            pltpu.VMEM((1, d), jnp.float32),    # k1 column sum of squares
            pltpu.VMEM((1, 1), jnp.float32),    # cosine dot accumulator
            pltpu.VMEM((tb, d), jnp.float32),   # cached normalized k1 tile
        ],
        compiler_params=pltpu.CompilerParams(
            dimension_semantics=("arbitrary", "arbitrary"),
            vmem_limit_bytes=_VMEM_LIMIT),
    )(q1r, k1)
    lcls_sum, stdloss_q1, stdmean_q1, stdmean_k1 = outs
    return lcls_sum[0, 0], stdloss_q1[0, 0], stdmean_q1[0, 0], stdmean_k1[0, 0]


# ----------------------------------------------------------------------------
# ByolLoss.forward
# ----------------------------------------------------------------------------
def byol_loss_forward(student, teacher, ncrops, use_cls,
                      frame_tile_rows=None, cls_tile_rows=None):
    del use_cls  # unused in the PyTorch forward as well
    q1, q2 = student
    k1, k2 = teacher
    B = k1.shape[0]
    D = q1.shape[-1]

    # frame path: single streaming pass over q2 & k2
    byol_frm_sum, loss_uniform_frm, std_frm, std_frm_t = _frame_pass(
        q2, k2, max_tile_rows=frame_tile_rows)
    loss_align = byol_frm_sum / B

    # cls path: single streaming pass over q1 (all crops) & k1
    q1r = q1.reshape(ncrops, B, D)           # == torch.chunk(q1, ncrops) stacked
    lcls_sum, loss_uniform_cls, std_cls, std_cls_t = _cls_pass(
        q1r, k1, max_tile_rows=cls_tile_rows)
    loss_cls = lcls_sum / B                  # == 0 when ncrops == 1

    return (loss_cls, loss_align, loss_uniform_frm, std_frm,
            loss_uniform_cls, std_cls, std_frm_t, std_cls_t)


# ----------------------------------------------------------------------------
# Pure-JAX reference (sanity check)
# ----------------------------------------------------------------------------
def _ref_normalize(x):
    nrm = jnp.sqrt(jnp.sum(x * x, axis=-1, keepdims=True))
    return x / jnp.maximum(nrm, _NORM_EPS)


def _ref_byol(p, z):
    pn = _ref_normalize(p)
    zn = _ref_normalize(z)
    return jnp.sum(2.0 - 2.0 * jnp.sum(pn * zn, axis=-1))


def _ref_variance(z):
    n = z.shape[0]
    zn = _ref_normalize(z)
    zs = jnp.sum(zn, axis=0)
    zss = jnp.sum(zn * zn, axis=0)
    var = zss / (n - 1.0) - (zs * zs) / (n * (n - 1.0))
    std = jnp.sqrt(var + _VAR_EPS)
    return jnp.mean(jnp.maximum(1.0 - std, 0.0)), jnp.mean(std)


def _ref_forward(student, teacher, ncrops):
    q1, q2 = student
    k1, k2 = teacher
    B = k1.shape[0]
    lu_frm, s_frm = _ref_variance(q2)
    lu_cls, s_cls = _ref_variance(q1)
    _, s_frm_t = _ref_variance(k2)
    _, s_cls_t = _ref_variance(k1)
    loss_cls = jnp.zeros((), jnp.float32)
    if ncrops > 1:
        q1c = q1.reshape(ncrops, B, q1.shape[-1])
        for i in range(1, ncrops):
            loss_cls = loss_cls + _ref_byol(q1c[i], k1) / B
    loss_align = _ref_byol(q2, k2) / B
    return (loss_cls, loss_align, lu_frm, s_frm, lu_cls, s_cls, s_frm_t, s_cls_t)


if __name__ == "__main__":
    # Small synthetic shapes consistent with the module:
    #   q1 (student cls tokens): (ncrops*B, D)   k1 (teacher cls): (B, D)
    #   q2 (student frames):     (Nf, D)         k2 (teacher frames): (Nf, D)
    # D = 128 keeps the lane axis dense; small tile overrides exercise the
    # row-tiled grids (including masked partial last tiles).
    ncrops, use_cls = 2, True
    B, D, Nf = 12, 128, 40

    key = jax.random.PRNGKey(0)
    kq1, kq2, kk1, kk2 = jax.random.split(key, 4)
    q1 = jax.random.normal(kq1, (ncrops * B, D), jnp.float32)
    q2 = jax.random.normal(kq2, (Nf, D), jnp.float32)
    k1 = jax.random.normal(kk1, (B, D), jnp.float32)
    k2 = jax.random.normal(kk2, (Nf, D), jnp.float32)

    out = byol_loss_forward((q1, q2), (k1, k2), ncrops, use_cls,
                            frame_tile_rows=16, cls_tile_rows=8)
    out = jax.block_until_ready(out)

    ref = _ref_forward((q1, q2), (k1, k2), ncrops)
    for a, b in zip(out, ref):
        assert jnp.allclose(a, b, rtol=1e-5, atol=1e-5), (a, b)

    print("KERNEL_OK")
</pallas_src>

<mosaic_0001>
module attributes {stable_mosaic.version = 11 : i64} {
  func.func @_frame_kernel(%arg0: i32, %arg1: memref<16x128xf32, #tpu.memory_space<vmem>>, %arg2: memref<16x128xf32, #tpu.memory_space<vmem>>, %arg3: memref<1x1xf32, #tpu.memory_space<vmem>>, %arg4: memref<1x1xf32, #tpu.memory_space<vmem>>, %arg5: memref<1x1xf32, #tpu.memory_space<vmem>>, %arg6: memref<1x1xf32, #tpu.memory_space<vmem>>, %arg7: memref<1x128xf32, #tpu.memory_space<vmem>>, %arg8: memref<1x128xf32, #tpu.memory_space<vmem>>, %arg9: memref<1x128xf32, #tpu.memory_space<vmem>>, %arg10: memref<1x128xf32, #tpu.memory_space<vmem>>, %arg11: memref<1x1xf32, #tpu.memory_space<vmem>>) attributes {dimension_semantics = [#tpu.dimension_semantics<arbitrary>], iteration_bounds = array<i64: 3>, scalar_prefetch = 0 : i64, scratch_operands = 5 : i64, tpu.core_type = #tpu.core_type<tc>, window_params = [{transform_indices = @transform_0, window_bounds = array<i64: 16, 128>}, {transform_indices = @transform_1, window_bounds = array<i64: 16, 128>}, {pipeline_mode = #tpu.pipeline_mode<synchronous>, transform_indices = @transform_2, window_bounds = array<i64: 1, 1>}, {pipeline_mode = #tpu.pipeline_mode<synchronous>, transform_indices = @transform_3, window_bounds = array<i64: 1, 1>}, {pipeline_mode = #tpu.pipeline_mode<synchronous>, transform_indices = @transform_4, window_bounds = array<i64: 1, 1>}, {pipeline_mode = #tpu.pipeline_mode<synchronous>, transform_indices = @transform_5, window_bounds = array<i64: 1, 1>}]} {
    %c0_i32 = arith.constant 0 : i32
    %0 = arith.cmpi eq, %arg0, %c0_i32 : i32
    %1 = arith.extui %0 : i1 to i32
    %c0_i32_0 = arith.constant 0 : i32
    %2 = arith.cmpi ne, %1, %c0_i32_0 : i32
    scf.if %2 {
      %cst_36 = arith.constant 0.000000e+00 : f32
      %70 = vector.broadcast %cst_36 : f32 to vector<1x128xf32>
      %c0_37 = arith.constant 0 : index
      %c0_38 = arith.constant 0 : index
      %71 = vector.load %arg7[%c0_37, %c0_38] : memref<1x128xf32, #tpu.memory_space<vmem>>, vector<1x128xf32>
      tpu.vector_store %arg7[%c0_37, %c0_38], %70 {strides = array<i32>} : memref<1x128xf32, #tpu.memory_space<vmem>>, vector<1x128xf32>,
      %cst_39 = arith.constant 0.000000e+00 : f32
      %72 = vector.broadcast %cst_39 : f32 to vector<1x128xf32>
      %c0_40 = arith.constant 0 : index
      %c0_41 = arith.constant 0 : index
      %73 = vector.load %arg8[%c0_40, %c0_41] : memref<1x128xf32, #tpu.memory_space<vmem>>, vector<1x128xf32>
      tpu.vector_store %arg8[%c0_40, %c0_41], %72 {strides = array<i32>} : memref<1x128xf32, #tpu.memory_space<vmem>>, vector<1x128xf32>,
      %cst_42 = arith.constant 0.000000e+00 : f32
      %74 = vector.broadcast %cst_42 : f32 to vector<1x128xf32>
      %c0_43 = arith.constant 0 : index
      %c0_44 = arith.constant 0 : index
      %75 = vector.load %arg9[%c0_43, %c0_44] : memref<1x128xf32, #tpu.memory_space<vmem>>, vector<1x128xf32>
      tpu.vector_store %arg9[%c0_43, %c0_44], %74 {strides = array<i32>} : memref<1x128xf32, #tpu.memory_space<vmem>>, vector<1x128xf32>,
      %cst_45 = arith.constant 0.000000e+00 : f32
      %76 = vector.broadcast %cst_45 : f32 to vector<1x128xf32>
      %c0_46 = arith.constant 0 : index
      %c0_47 = arith.constant 0 : index
      %77 = vector.load %arg10[%c0_46, %c0_47] : memref<1x128xf32, #tpu.memory_space<vmem>>, vector<1x128xf32>
      tpu.vector_store %arg10[%c0_46, %c0_47], %76 {strides = array<i32>} : memref<1x128xf32, #tpu.memory_space<vmem>>, vector<1x128xf32>,
      %cst_48 = arith.constant 0.000000e+00 : f32
      %78 = vector.broadcast %cst_48 : f32 to vector<1x1xf32>
      %c0_49 = arith.constant 0 : index
      %c0_50 = arith.constant 0 : index
      %79 = vector.load %arg11[%c0_49, %c0_50] : memref<1x1xf32, #tpu.memory_space<vmem>>, vector<1x1xf32>
      tpu.vector_store %arg11[%c0_49, %c0_50], %78 {strides = array<i32>} : memref<1x1xf32, #tpu.memory_space<vmem>>, vector<1x1xf32>,
    } else {
    }
    %3 = tpu.iota {dimensions = array<i32: 0>} : vector<16x1xi32>
    %c16_i32 = arith.constant 16 : i32
    %4 = arith.muli %arg0, %c16_i32 : i32
    %5 = vector.broadcast %4 : i32 to vector<16x1xi32>
    %6 = arith.addi %3, %5 : vector<16x1xi32>
    %c40_i32 = arith.constant 40 : i32
    %7 = vector.broadcast %c40_i32 : i32 to vector<16x1xi32>
    %8 = arith.cmpi slt, %6, %7 : vector<16x1xi32>
    %c0 = arith.constant 0 : index
    %c0_1 = arith.constant 0 : index
    %9 = vector.load %arg1[%c0, %c0_1] : memref<16x128xf32, #tpu.memory_space<vmem>>, vector<16x128xf32>
    %c0_2 = arith.constant 0 : index
    %c0_3 = arith.constant 0 : index
    %10 = vector.load %arg2[%c0_2, %c0_3] : memref<16x128xf32, #tpu.memory_space<vmem>>, vector<16x128xf32>
    %11 = arith.mulf %9, %9 : vector<16x128xf32>
    %cst = arith.constant dense<0.000000e+00> : vector<16xf32>
    %12 = vector.multi_reduction <add>, %11, %cst [1] : vector<16x128xf32> to vector<16xf32>
    %13 = vector.shape_cast %12 : vector<16xf32> to vector<16x1xf32>
    %14 = math.sqrt %13 : vector<16x1xf32>
    %cst_4 = arith.constant 9.99999996E-13 : f32
    %15 = vector.broadcast %cst_4 : f32 to vector<16x1xf32>
    %16 = arith.maximumf %14, %15 : vector<16x1xf32>
    %17 = tpu.reciprocal %16 : vector<16x1xf32> -> vector<16x1xf32>
    %18 = vector.broadcast %17 : vector<16x1xf32> to vector<16x128xf32>
    %19 = arith.mulf %9, %18 : vector<16x128xf32>
    %cst_5 = arith.constant 0.000000e+00 : f32
    %20 = vector.shape_cast %8 : vector<16x1xi1> to vector<16x1xi1>
    %21 = vector.broadcast %20 : vector<16x1xi1> to vector<16x128xi1>
    %22 = vector.broadcast %cst_5 : f32 to vector<16x128xf32>
    %23 = arith.select %21, %19, %22 : vector<16x128xi1>, vector<16x128xf32>
    %24 = arith.mulf %10, %10 : vector<16x128xf32>
    %cst_6 = arith.constant dense<0.000000e+00> : vector<16xf32>
    %25 = vector.multi_reduction <add>, %24, %cst_6 [1] : vector<16x128xf32> to vector<16xf32>
    %26 = vector.shape_cast %25 : vector<16xf32> to vector<16x1xf32>
    %27 = math.sqrt %26 : vector<16x1xf32>
    %cst_7 = arith.constant 9.99999996E-13 : f32
    %28 = vector.broadcast %cst_7 : f32 to vector<16x1xf32>
    %29 = arith.maximumf %27, %28 : vector<16x1xf32>
    %30 = tpu.reciprocal %29 : vector<16x1xf32> -> vector<16x1xf32>
    %31 = vector.broadcast %30 : vector<16x1xf32> to vector<16x128xf32>
    %32 = arith.mulf %10, %31 : vector<16x128xf32>
    %cst_8 = arith.constant 0.000000e+00 : f32
    %33 = vector.shape_cast %8 : vector<16x1xi1> to vector<16x1xi1>
    %34 = vector.broadcast %33 : vector<16x1xi1> to vector<16x128xi1>
    %35 = vector.broadcast %cst_8 : f32 to vector<16x128xf32>
    %36 = arith.select %34, %32, %35 : vector<16x128xi1>, vector<16x128xf32>
    %c0_9 = arith.constant 0 : index
    %c0_10 = arith.constant 0 : index
    %37 = vector.load %arg7[%c0_9, %c0_10] : memref<1x128xf32, #tpu.memory_space<vmem>>, vector<1x128xf32>
    %cst_11 = arith.constant dense<0.000000e+00> : vector<128xf32>
    %38 = vector.multi_reduction <add>, %23, %cst_11 [0] : vector<16x128xf32> to vector<128xf32>
    %39 = vector.shape_cast %38 : vector<128xf32> to vector<1x128xf32>
    %40 = arith.addf %37, %39 : vector<1x128xf32>
    %c0_12 = arith.constant 0 : index
    %c0_13 = arith.constant 0 : index
    %41 = vector.load %arg7[%c0_12, %c0_13] : memref<1x128xf32, #tpu.memory_space<vmem>>, vector<1x128xf32>
    tpu.vector_store %arg7[%c0_12, %c0_13], %40 {strides = array<i32>} : memref<1x128xf32, #tpu.memory_space<vmem>>, vector<1x128xf32>,
    %c0_14 = arith.constant 0 : index
    %c0_15 = arith.constant 0 : index
    %42 = vector.load %arg8[%c0_14, %c0_15] : memref<1x128xf32, #tpu.memory_space<vmem>>, vector<1x128xf32>
    %43 = arith.mulf %23, %23 : vector<16x128xf32>
    %cst_16 = arith.constant dense<0.000000e+00> : vector<128xf32>
    %44 = vector.multi_reduction <add>, %43, %cst_16 [0] : vector<16x128xf32> to vector<128xf32>
    %45 = vector.shape_cast %44 : vector<128xf32> to vector<1x128xf32>
    %46 = arith.addf %42, %45 : vector<1x128xf32>
    %c0_17 = arith.constant 0 : index
    %c0_18 = arith.constant 0 : index
    %47 = vector.load %arg8[%c0_17, %c0_18] : memref<1x128xf32, #tpu.memory_space<vmem>>, vector<1x128xf32>
    tpu.vector_store %arg8[%c0_17, %c0_18], %46 {strides = array<i32>} : memref<1x128xf32, #tpu.memory_space<vmem>>, vector<1x128xf32>,
    %c0_19 = arith.constant 0 : index
    %c0_20 = arith.constant 0 : index
    %48 = vector.load %arg9[%c0_19, %c0_20] : memref<1x128xf32, #tpu.memory_space<vmem>>, vector<1x128xf32>
    %cst_21 = arith.constant dense<0.000000e+00> : vector<128xf32>
    %49 = vector.multi_reduction <add>, %36, %cst_21 [0] : vector<16x128xf32> to vector<128xf32>
    %50 = vector.shape_cast %49 : vector<128xf32> to vector<1x128xf32>
    %51 = arith.addf %48, %50 : vector<1x128xf32>
    %c0_22 = arith.constant 0 : index
    %c0_23 = arith.constant 0 : index
    %52 = vector.load %arg9[%c0_22, %c0_23] : memref<1x128xf32, #tpu.memory_space<vmem>>, vector<1x128xf32>
    tpu.vector_store %arg9[%c0_22, %c0_23], %51 {strides = array<i32>} : memref<1x128xf32, #tpu.memory_space<vmem>>, vector<1x128xf32>,
    %c0_24 = arith.constant 0 : index
    %c0_25 = arith.constant 0 : index
    %53 = vector.load %arg10[%c0_24, %c0_25] : memref<1x128xf32, #tpu.memory_space<vmem>>, vector<1x128xf32>
    %54 = arith.mulf %36, %36 : vector<16x128xf32>
    %cst_26 = arith.constant dense<0.000000e+00> : vector<128xf32>
    %55 = vector.multi_reduction <add>, %54, %cst_26 [0] : vector<16x128xf32> to vector<128xf32>
    %56 = vector.shape_cast %55 : vector<128xf32> to vector<1x128xf32>
    %57 = arith.addf %53, %56 : vector<1x128xf32>
    %c0_27 = arith.constant 0 : index
    %c0_28 = arith.constant 0 : index
    %58 = vector.load %arg10[%c0_27, %c0_28] : memref<1x128xf32, #tpu.memory_space<vmem>>, vector<1x128xf32>
    tpu.vector_store %arg10[%c0_27, %c0_28], %57 {strides = array<i32>} : memref<1x128xf32, #tpu.memory_space<vmem>>, vector<1x128xf32>,
    %59 = arith.mulf %23, %36 : vector<16x128xf32>
    %cst_29 = arith.constant dense<0.000000e+00> : vector<16xf32>
    %60 = vector.multi_reduction <add>, %59, %cst_29 [1] : vector<16x128xf32> to vector<16xf32>
    %61 = vector.shape_cast %60 : vector<16xf32> to vector<16x1xf32>
    %c0_30 = arith.constant 0 : index
    %c0_31 = arith.constant 0 : index
    %62 = vector.load %arg11[%c0_30, %c0_31] : memref<1x1xf32, #tpu.memory_space<vmem>>, vector<1x1xf32>
    %cst_32 = arith.constant dense<0.000000e+00> : vector<1xf32>
    %63 = vector.multi_reduction <add>, %61, %cst_32 [0] : vector<16x1xf32> to vector<1xf32>
    %64 = vector.shape_cast %63 : vector<1xf32> to vector<1x1xf32>
    %65 = arith.addf %62, %64 : vector<1x1xf32>
    %c0_33 = arith.constant 0 : index
    %c0_34 = arith.constant 0 : index
    %66 = vector.load %arg11[%c0_33, %c0_34] : memref<1x1xf32, #tpu.memory_space<vmem>>, vector<1x1xf32>
    tpu.vector_store %arg11[%c0_33, %c0_34], %65 {strides = array<i32>} : memref<1x1xf32, #tpu.memory_space<vmem>>, vector<1x1xf32>,
    %c2_i32 = arith.constant 2 : i32
    %67 = arith.cmpi eq, %arg0, %c2_i32 : i32
    %68 = arith.extui %67 : i1 to i32
    %c0_i32_35 = arith.constant 0 : i32
    %69 = arith.cmpi ne, %68, %c0_i32_35 : i32
    scf.if %69 {
      %cst_36 = arith.constant 2.000000e+00 : f32
      %cst_37 = arith.constant 4.000000e+01 : f32
      %70 = arith.mulf %cst_36, %cst_37 : f32
      %c0_38 = arith.constant 0 : index
      %c0_39 = arith.constant 0 : index
      %71 = vector.load %arg11[%c0_38, %c0_39] : memref<1x1xf32, #tpu.memory_space<vmem>>, vector<1x1xf32>
      %cst_40 = arith.constant 2.000000e+00 : f32
      %72 = vector.broadcast %cst_40 : f32 to vector<1x1xf32>
      %73 = arith.mulf %72, %71 : vector<1x1xf32>
      %74 = vector.broadcast %70 : f32 to vector<1x1xf32>
      %75 = arith.subf %74, %73 : vector<1x1xf32>
      %c0_41 = arith.constant 0 : index
      %c0_42 = arith.constant 0 : index
      %76 = vector.load %arg3[%c0_41, %c0_42] : memref<1x1xf32, #tpu.memory_space<vmem>>, vector<1x1xf32>
      tpu.vector_store %arg3[%c0_41, %c0_42], %75 {strides = array<i32>} : memref<1x1xf32, #tpu.memory_space<vmem>>, vector<1x1xf32>,
      %c0_43 = arith.constant 0 : index
      %c0_44 = arith.constant 0 : index
      %77 = vector.load %arg7[%c0_43, %c0_44] : memref<1x128xf32, #tpu.memory_space<vmem>>, vector<1x128xf32>
      %c0_45 = arith.constant 0 : index
      %c0_46 = arith.constant 0 : index
      %78 = vector.load %arg8[%c0_45, %c0_46] : memref<1x128xf32, #tpu.memory_space<vmem>>, vector<1x128xf32>
      %cst_47 = arith.constant 4.000000e+01 : f32
      %cst_48 = arith.constant 1.000000e+00 : f32
      %79 = arith.subf %cst_47, %cst_48 : f32
      %80 = vector.broadcast %79 : f32 to vector<1x128xf32>
      %81 = arith.divf %78, %80 : vector<1x128xf32>
      %82 = arith.mulf %77, %77 : vector<1x128xf32>
      %cst_49 = arith.constant 4.000000e+01 : f32
      %cst_50 = arith.constant 1.000000e+00 : f32
      %83 = arith.subf %cst_49, %cst_50 : f32
      %cst_51 = arith.constant 4.000000e+01 : f32
      %84 = arith.mulf %cst_51, %83 : f32
      %85 = vector.broadcast %84 : f32 to vector<1x128xf32>
      %86 = arith.divf %82, %85 : vector<1x128xf32>
      %87 = arith.subf %81, %86 : vector<1x128xf32>
      %cst_52 = arith.constant 9.99999997E-7 : f32
      %88 = vector.broadcast %cst_52 : f32 to vector<1x128xf32>
      %89 = arith.addf %87, %88 : vector<1x128xf32>
      %90 = math.sqrt %89 : vector<1x128xf32>
      %cst_53 = arith.constant 1.000000e+00 : f32
      %91 = vector.broadcast %cst_53 : f32 to vector<1x128xf32>
      %92 = arith.subf %91, %90 : vector<1x128xf32>
      %cst_54 = arith.constant 0.000000e+00 : f32
      %93 = vector.broadcast %cst_54 : f32 to vector<1x128xf32>
      %94 = arith.maximumf %92, %93 : vector<1x128xf32>
      %cst_55 = arith.constant dense<0.000000e+00> : vector<1xf32>
      %95 = vector.multi_reduction <add>, %94, %cst_55 [1] : vector<1x128xf32> to vector<1xf32>
      %96 = vector.shape_cast %95 : vector<1xf32> to vector<1x1xf32>
      %cst_56 = arith.constant 1.280000e+02 : f32
      %97 = vector.broadcast %cst_56 : f32 to vector<1x1xf32>
      %98 = arith.divf %96, %97 : vector<1x1xf32>
      %c0_57 = arith.constant 0 : index
      %c0_58 = arith.constant 0 : index
      %99 = vector.load %arg4[%c0_57, %c0_58] : memref<1x1xf32, #tpu.memory_space<vmem>>, vector<1x1xf32>
      tpu.vector_store %arg4[%c0_57, %c0_58], %98 {strides = array<i32>} : memref<1x1xf32, #tpu.memory_space<vmem>>, vector<1x1xf32>,
      %cst_59 = arith.constant dense<0.000000e+00> : vector<1xf32>
      %100 = vector.multi_reduction <add>, %90, %cst_59 [1] : vector<1x128xf32> to vector<1xf32>
      %101 = vector.shape_cast %100 : vector<1xf32> to vector<1x1xf32>
      %cst_60 = arith.constant 1.280000e+02 : f32
      %102 = vector.broadcast %cst_60 : f32 to vector<1x1xf32>
      %103 = arith.divf %101, %102 : vector<1x1xf32>
      %c0_61 = arith.constant 0 : index
      %c0_62 = arith.constant 0 : index
      %104 = vector.load %arg5[%c0_61, %c0_62] : memref<1x1xf32, #tpu.memory_space<vmem>>, vector<1x1xf32>
      tpu.vector_store %arg5[%c0_61, %c0_62], %103 {strides = array<i32>} : memref<1x1xf32, #tpu.memory_space<vmem>>, vector<1x1xf32>,
      %c0_63 = arith.constant 0 : index
      %c0_64 = arith.constant 0 : index
      %105 = vector.load %arg9[%c0_63, %c0_64] : memref<1x128xf32, #tpu.memory_space<vmem>>, vector<1x128xf32>
      %c0_65 = arith.constant 0 : index
      %c0_66 = arith.constant 0 : index
      %106 = vector.load %arg10[%c0_65, %c0_66] : memref<1x128xf32, #tpu.memory_space<vmem>>, vector<1x128xf32>
      %cst_67 = arith.constant 4.000000e+01 : f32
      %cst_68 = arith.constant 1.000000e+00 : f32
      %107 = arith.subf %cst_67, %cst_68 : f32
      %108 = vector.broadcast %107 : f32 to vector<1x128xf32>
      %109 = arith.divf %106, %108 : vector<1x128xf32>
      %110 = arith.mulf %105, %105 : vector<1x128xf32>
      %cst_69 = arith.constant 4.000000e+01 : f32
      %cst_70 = arith.constant 1.000000e+00 : f32
      %111 = arith.subf %cst_69, %cst_70 : f32
      %cst_71 = arith.constant 4.000000e+01 : f32
      %112 = arith.mulf %cst_71, %111 : f32
      %113 = vector.broadcast %112 : f32 to vector<1x128xf32>
      %114 = arith.divf %110, %113 : vector<1x128xf32>
      %115 = arith.subf %109, %114 : vector<1x128xf32>
      %cst_72 = arith.constant 9.99999997E-7 : f32
      %116 = vector.broadcast %cst_72 : f32 to vector<1x128xf32>
      %117 = arith.addf %115, %116 : vector<1x128xf32>
      %118 = math.sqrt %117 : vector<1x128xf32>
      %cst_73 = arith.constant dense<0.000000e+00> : vector<1xf32>
      %119 = vector.multi_reduction <add>, %118, %cst_73 [1] : vector<1x128xf32> to vector<1xf32>
      %120 = vector.shape_cast %119 : vector<1xf32> to vector<1x1xf32>
      %cst_74 = arith.constant 1.280000e+02 : f32
      %121 = vector.broadcast %cst_74 : f32 to vector<1x1xf32>
      %122 = arith.divf %120, %121 : vector<1x1xf32>
      %c0_75 = arith.constant 0 : index
      %c0_76 = arith.constant 0 : index
      %123 = vector.load %arg6[%c0_75, %c0_76] : memref<1x1xf32, #tpu.memory_space<vmem>>, vector<1x1xf32>
      tpu.vector_store %arg6[%c0_75, %c0_76], %122 {strides = array<i32>} : memref<1x1xf32, #tpu.memory_space<vmem>>, vector<1x1xf32>,
    } else {
    }
    return
  }
  func.func @transform_0(%arg0: i32) -> (i32, i32) {
    %c0_i32 = arith.constant 0 : i32
    %c0_i32_0 = arith.constant 0 : i32
    return %arg0, %c0_i32 : i32, i32
  }
  func.func @transform_1(%arg0: i32) -> (i32, i32) {
    %c0_i32 = arith.constant 0 : i32
    %c0_i32_0 = arith.constant 0 : i32
    return %arg0, %c0_i32 : i32, i32
  }
  func.func @transform_2(%arg0: i32) -> (i32, i32) {
    %c0_i32 = arith.constant 0 : i32
    %c0_i32_0 = arith.constant 0 : i32
    %c0_i32_1 = arith.constant 0 : i32
    return %c0_i32, %c0_i32_0 : i32, i32
  }
  func.func @transform_3(%arg0: i32) -> (i32, i32) {
    %c0_i32 = arith.constant 0 : i32
    %c0_i32_0 = arith.constant 0 : i32
    %c0_i32_1 = arith.constant 0 : i32
    return %c0_i32, %c0_i32_0 : i32, i32
  }
  func.func @transform_4(%arg0: i32) -> (i32, i32) {
    %c0_i32 = arith.constant 0 : i32
    %c0_i32_0 = arith.constant 0 : i32
    %c0_i32_1 = arith.constant 0 : i32
    return %c0_i32, %c0_i32_0 : i32, i32
  }
  func.func @transform_5(%arg0: i32) -> (i32, i32) {
    %c0_i32 = arith.constant 0 : i32
    %c0_i32_0 = arith.constant 0 : i32
    %c0_i32_1 = arith.constant 0 : i32
    return %c0_i32, %c0_i32_0 : i32, i32
  }
}

</mosaic_0001>

<llo_original>
// kernel: tpu_custom_call.1
$region0: #{tpu_custom_call.1}
  #allocation0 [shape = 'u32[]', space=smem, size = 0x4, offset = 0x4, fixed_abs, tag = 'smem constant byte address 0x4 - core index']
  #allocation1 [shape = 'u32[144,128]{1,0:T(1,128)}', space=vmem, size = 0x12000, scoped, tag = 'internal scratch']
  #allocation2 [shape = 'f32[1,128]{1,0:T(1,128)}', space=vmem, size = 0x200, scoped, tag = 'scratch operand']
  #allocation3 [shape = 'f32[1,128]{1,0:T(1,128)}', space=vmem, size = 0x200, scoped, tag = 'scratch operand']
  #allocation4 [shape = 'f32[1,128]{1,0:T(1,128)}', space=vmem, size = 0x200, scoped, tag = 'scratch operand']
  #allocation5 [shape = 'f32[1,128]{1,0:T(1,128)}', space=vmem, size = 0x200, scoped, tag = 'scratch operand']
  #allocation6 [shape = 'f32[1,1]{1,0:T(1,128)}', space=vmem, size = 0x200, scoped, tag = 'scratch operand']
  %s0 = inlined_call_operand.hbm [shape: f32[40,128], index: 0, kind: input, shape index: {}]
  %s1 = inlined_call_operand.hbm [shape: f32[40,128], index: 1, kind: input, shape index: {}]
  %s2 = inlined_call_operand.hbm [shape: f32[1,1], index: 2, kind: output, shape index: {0}]
  %s3 = inlined_call_operand.hbm [shape: f32[1,1], index: 3, kind: output, shape index: {1}]
  %s4 = inlined_call_operand.hbm [shape: f32[1,1], index: 4, kind: output, shape index: {2}]
  %s5 = inlined_call_operand.hbm [shape: f32[1,1], index: 5, kind: output, shape index: {3}]
  %6 = xla_tuple %s2, %s3, %s4, %s5
  %s7 = sld [smem:[#allocation0]]
  $region81: #{tpu_custom_call.1} parent=0
    _
  %s9 = ssub.s32 1, %s7
  %s10 = scalar_select 0, %s9, %s7
  $region1: #{tpu_custom_call.1} parent=0
    #allocation7 [shape = 'u8[16384]{0}', space=vmem, size = 0x4000, scoped, tag = 'input window, operand 0']
    #allocation8 [shape = 's32[2]{0}', space=sflag, size = 0x8, scoped, tag = 'scoped memory for tpu_custom_call.1']
    #allocation9 [shape = 's32[2]{0}', space=sflag, size = 0x8, scoped, tag = 'scoped memory for tpu_custom_call.1']
    #allocation10 [shape = 'u8[16384]{0}', space=vmem, size = 0x4000, scoped, tag = 'input window, operand 1']
    #allocation11 [shape = 's32[2]{0}', space=sflag, size = 0x8, scoped, tag = 'scoped memory for tpu_custom_call.1']
    #allocation12 [shape = 'u8[512]{0}', space=vmem, size = 0x400, scoped, tag = 'output window, operand 0, single buffered']
    #allocation13 [shape = 'u8[512]{0}', space=vmem, size = 0x400, scoped, tag = 'output window, operand 1, single buffered']
    #allocation14 [shape = 's32[1]{0}', space=sflag, size = 0x4, scoped, tag = 'scoped memory for tpu_custom_call.1']
    #allocation15 [shape = 'u8[512]{0}', space=vmem, size = 0x400, scoped, tag = 'output window, operand 2, single buffered']
    #allocation16 [shape = 'u8[512]{0}', space=vmem, size = 0x400, scoped, tag = 'output window, operand 3, single buffered']
    #allocation17 [shape = 's32[1]{0}', space=sflag, size = 0x4, scoped, tag = 'scoped memory for tpu_custom_call.1']
    %11 = vsyncpa [#allocation8], 0
    %s12 = scalar_lea.sflag [#allocation8], 1
    %13 = vsyncpa %s12, 0
    %14 = vsyncpa [#allocation11], 0
    %s15 = scalar_lea.sflag [#allocation11], 1
    %16 = vsyncpa %s15, 0
    %17 = vsyncpa [#allocation9], 0
    %18 = vsyncpa [#allocation14], 0
    %19 = vsyncpa [#allocation17], 0
    loop: start=0, step=1, limit=5
    $region2: #{tpu_custom_call.1} parent=1 // loop_pre_header
      _
    $region3: #{tpu_custom_call.1} parent=1 // loop_header
      %s21 = sphi 0, %s25
      %p22 = scmp.ge.s32.totalorder %s21, 5
      %s31 = sphi 0, %s33
      %s34 = sphi 0, %s31
      %s35 = sphi 0, %s34
      %s51 = sphi 0, %s35
      %s57 = sphi 0, %s59
      %s60 = sphi 0, %s57
      %s61 = sphi 0, %s60
      %s77 = sphi 0, %s61
      %s81 = sphi 0, %s81
      %s83 = sphi 0, %s81
      %s84 = sphi 0, %s83
      %s98 = sphi 0, %s84
      %s102 = sphi 0, %s102
      %s104 = sphi 0, %s102
      %s105 = sphi 0, %s104
      %s119 = sphi 0, %s105
      %s123 = sphi 0, %s123
      %s125 = sphi 0, %s123
      %s126 = sphi 0, %s125
      %s140 = sphi 0, %s126
      %s144 = sphi 0, %s144
      %s146 = sphi 0, %s144
      %s147 = sphi 0, %s146
      %s161 = sphi 0, %s147
    $region4: #{tpu_custom_call.1} parent=1 // loop_header_branch
      %24 = sbr.rel (%p22) target = $region8
    $region5: #{tpu_custom_call.1} parent=1 // loop_body
      %s26 = ssub.s32 %s21, 1
      %s27 = ssub.s32 %s21, 2
      %s28 = sadd.s32 %s21, 1
      %s29 = ssub.s32 %s21, %s28
      %p30 = scmp.eq.s32.totalorder %s29, 0
      %s32 = sadd.s32 %s31, 1
      %s33 = scalar_select %p30, %s31, %s32
      %p36 = pneg %p30
      %p37 = scmp.eq.s32.totalorder %s21, 2
      %p38 = por %p36, %p37
      %p39 = scmp.ne.s32.totalorder %s31, %s34
      %p40 = scmp.eq.s32.totalorder %s21, 0
      %p41 = por %p39, %p40
      %p42 = scmp.ne.s32.totalorder %s31, %s34
      %p43 = scmp.eq.s32.totalorder %s26, 2
      %p44 = por %p42, %p43
      %p45 = scmp.ne.s32.totalorder %s34, %s35
      %p46 = scmp.eq.s32.totalorder %s26, 0
      %p47 = por %p45, %p46
      %p48 = scmp.ne.s32.totalorder %s34, %s35
      %p49 = scmp.eq.s32.totalorder %s27, 2
      %p50 = por %p48, %p49
      %p52 = scmp.ne.s32.totalorder %s35, %s51
      %p53 = scmp.eq.s32.totalorder %s27, 0
      %p54 = por %p52, %p53
      %s55 = ssub.s32 %s21, %s28
      %p56 = scmp.eq.s32.totalorder %s55, 0
      %s58 = sadd.s32 %s57, 1
      %s59 = scalar_select %p56, %s57, %s58
      %p62 = pneg %p56
      %p63 = scmp.eq.s32.totalorder %s21, 2
      %p64 = por %p62, %p63
      %p65 = scmp.ne.s32.totalorder %s57, %s60
      %p66 = scmp.eq.s32.totalorder %s21, 0
      %p67 = por %p65, %p66
      %p68 = scmp.ne.s32.totalorder %s57, %s60
      %p69 = scmp.eq.s32.totalorder %s26, 2
      %p70 = por %p68, %p69
      %p71 = scmp.ne.s32.totalorder %s60, %s61
      %p72 = scmp.eq.s32.totalorder %s26, 0
      %p73 = por %p71, %p72
      %p74 = scmp.ne.s32.totalorder %s60, %s61
      %p75 = scmp.eq.s32.totalorder %s27, 2
      %p76 = por %p74, %p75
      %p78 = scmp.ne.s32.totalorder %s61, %s77
      %p79 = scmp.eq.s32.totalorder %s27, 0
      %p80 = por %p78, %p79
      %s82 = sadd.s32 %s81, 1
      %p85 = scmp.eq.s32.totalorder %s21, 2
      %p86 = scmp.ne.s32.totalorder %s81, %s83
      %p87 = scmp.eq.s32.totalorder %s21, 0
      %p88 = por %p86, %p87
      %p89 = scmp.ne.s32.totalorder %s81, %s83
      %p90 = scmp.eq.s32.totalorder %s26, 2
      %p91 = por %p89, %p90
      %p92 = scmp.ne.s32.totalorder %s83, %s84
      %p93 = scmp.eq.s32.totalorder %s26, 0
      %p94 = por %p92, %p93
      %p95 = scmp.ne.s32.totalorder %s83, %s84
      %p96 = scmp.eq.s32.totalorder %s27, 2
      %p97 = por %p95, %p96
      %p99 = scmp.ne.s32.totalorder %s84, %s98
      %p100 = scmp.eq.s32.totalorder %s27, 0
      %p101 = por %p99, %p100
      %s103 = sadd.s32 %s102, 1
      %p106 = scmp.eq.s32.totalorder %s21, 2
      %p107 = scmp.ne.s32.totalorder %s102, %s104
      %p108 = scmp.eq.s32.totalorder %s21, 0
      %p109 = por %p107, %p108
      %p110 = scmp.ne.s32.totalorder %s102, %s104
      %p111 = scmp.eq.s32.totalorder %s26, 2
      %p112 = por %p110, %p111
      %p113 = scmp.ne.s32.totalorder %s104, %s105
      %p114 = scmp.eq.s32.totalorder %s26, 0
      %p115 = por %p113, %p114
      %p116 = scmp.ne.s32.totalorder %s104, %s105
      %p117 = scmp.eq.s32.totalorder %s27, 2
      %p118 = por %p116, %p117
      %p120 = scmp.ne.s32.totalorder %s105, %s119
      %p121 = scmp.eq.s32.totalorder %s27, 0
      %p122 = por %p120, %p121
      %s124 = sadd.s32 %s123, 1
      %p127 = scmp.eq.s32.totalorder %s21, 2
      %p128 = scmp.ne.s32.totalorder %s123, %s125
      %p129 = scmp.eq.s32.totalorder %s21, 0
      %p130 = por %p128, %p129
      %p131 = scmp.ne.s32.totalorder %s123, %s125
      %p132 = scmp.eq.s32.totalorder %s26, 2
      %p133 = por %p131, %p132
      %p134 = scmp.ne.s32.totalorder %s125, %s126
      %p135 = scmp.eq.s32.totalorder %s26, 0
      %p136 = por %p134, %p135
      %p137 = scmp.ne.s32.totalorder %s125, %s126
      %p138 = scmp.eq.s32.totalorder %s27, 2
      %p139 = por %p137, %p138
      %p141 = scmp.ne.s32.totalorder %s126, %s140
      %p142 = scmp.eq.s32.totalorder %s27, 0
      %p143 = por %p141, %p142
      %s145 = sadd.s32 %s144, 1
      %p148 = scmp.eq.s32.totalorder %s21, 2
      %p149 = scmp.ne.s32.totalorder %s144, %s146
      %p150 = scmp.eq.s32.totalorder %s21, 0
      %p151 = por %p149, %p150
      %p152 = scmp.ne.s32.totalorder %s144, %s146
      %p153 = scmp.eq.s32.totalorder %s26, 2
      %p154 = por %p152, %p153
      %p155 = scmp.ne.s32.totalorder %s146, %s147
      %p156 = scmp.eq.s32.totalorder %s26, 0
      %p157 = por %p155, %p156
      %p158 = scmp.ne.s32.totalorder %s146, %s147
      %p159 = scmp.eq.s32.totalorder %s27, 2
      %p160 = por %p158, %p159
      %p162 = scmp.ne.s32.totalorder %s147, %s161
      %p163 = scmp.eq.s32.totalorder %s27, 0
      %p164 = por %p162, %p163
      %p165 = scmp.le.s32.totalorder 1, %s21
      %p166 = scmp.lt.s32.totalorder %s21, 4
      %p167 = pnand %p165, %p166
      %p168 = pneg %p167
      // Predicated region
      $region9: #{tpu_custom_call.1} parent=5 // pred_check
        _
      $region10: #{tpu_custom_call.1} parent=5 // pred_check_branch
        %170 = sbr.rel (%p167) target = $region12
      $region11: #{tpu_custom_call.1} parent=5 // pred_region
        %s171 = ssub.s32 %s21, 1
      $region12: #{tpu_custom_call.1} parent=5 // pred_fallthru
        _
      %p172 = scmp.lt.s32.totalorder %s21, 3
      // Predicated region
      $region13: #{tpu_custom_call.1} parent=5 // pred_check
        %p173 = pneg %p172
      $region14: #{tpu_custom_call.1} parent=5 // pred_check_branch
        %175 = sbr.rel (%p173) target = $region16
      $region15: #{tpu_custom_call.1} parent=5 // pred_region
        // Predicated region
        $region17: #{tpu_custom_call.1} parent=15 // pred_check
          %p176 = pneg %p41
        $region18: #{tpu_custom_call.1} parent=15 // pred_check_branch
          %178 = sbr.rel (%p176) target = $region20
        $region19: #{tpu_custom_call.1} parent=15 // pred_region
          %s179 = sand.u32 %s31, 1
          %s180 = scalar_lea.sflag [#allocation8], %s179
          %s181 = sand.u32 %s31, 1
          %s182 = smul.addr %s181, 16
          %s183 = scalar_lea.vmem [#allocation7], %s182
          %s184 = smul.u32 2, %s21
          %s185 = ssub.s32 5, %s184
          %p186 = scmp.lt.s32.totalorder %s185, 2
          %s187 = scalar_select %p186, %s185, 2
          %s188 = smul.u32 128, %s187
          %s190 = ssub.s32 256, %s188
          %191 = vsyncadd %s180, %s190
          %p192 = scmp.ne.s32.totalorder 0, %s188
          %s193 = smul.addr %s184, 128
          %s194 = scalar_lea.hbm %s0, %s193
          %s195 = smul.u32 8, %s187
          %s196 = sshll.u32 %s183, 4
          %s197 = int_to_ptr.vmem [resolvable:$true] %s196
          %s198 = sshll.u32 %s195, 4
          %202 = dma.hbm_to_vmem [thread:$0]  (%p192), %s194, %s198, %s197, %s180, 128, 128, 8
        $region20: #{tpu_custom_call.1} parent=15 // pred_fallthru
          _
        // Predicated region
        $region21: #{tpu_custom_call.1} parent=15 // pred_check
          %p203 = pneg %p67
        $region22: #{tpu_custom_call.1} parent=15 // pred_check_branch
          %205 = sbr.rel (%p203) target = $region24
        $region23: #{tpu_custom_call.1} parent=15 // pred_region
          %s206 = sand.u32 %s57, 1
          %s207 = scalar_lea.sflag [#allocation11], %s206
          %s208 = sand.u32 %s57, 1
          %s209 = smul.addr %s208, 16
          %s210 = scalar_lea.vmem [#allocation10], %s209
          %s211 = smul.u32 2, %s21
          %s212 = ssub.s32 5, %s211
          %p213 = scmp.lt.s32.totalorder %s212, 2
          %s214 = scalar_select %p213, %s212, 2
          %s215 = smul.u32 128, %s214
          %s217 = ssub.s32 256, %s215
          %218 = vsyncadd %s207, %s217
          %p219 = scmp.ne.s32.totalorder 0, %s215
          %s220 = smul.addr %s211, 128
          %s221 = scalar_lea.hbm %s1, %s220
          %s222 = smul.u32 8, %s214
          %s223 = sshll.u32 %s210, 4
          %s224 = int_to_ptr.vmem [resolvable:$true] %s223
          %s225 = sshll.u32 %s222, 4
          %229 = dma.hbm_to_vmem [thread:$0]  (%p219), %s221, %s225, %s224, %s207, 128, 128, 8
        $region24: #{tpu_custom_call.1} parent=15 // pred_fallthru
          _
      $region16: #{tpu_custom_call.1} parent=5 // pred_fallthru
        _
      %p230 = scmp.le.s32.totalorder 1, %s21
      %p231 = scmp.lt.s32.totalorder %s21, 4
      %p232 = pnand %p230, %p231
      %p233 = pneg %p232
      // Predicated region
      $region25: #{tpu_custom_call.1} parent=5 // pred_check
        _
      $region26: #{tpu_custom_call.1} parent=5 // pred_check_branch
        %235 = sbr.rel (%p232) target = $region28
      $region27: #{tpu_custom_call.1} parent=5 // pred_region
        %s236 = ssub.s32 %s21, 1
        %s237 = sand.u32 %s34, 1
        %s238 = scalar_lea.sflag [#allocation8], %s237
        %s239 = sand.u32 %s34, 1
        %s240 = smul.addr %s239, 16
        %s241 = scalar_lea.vmem [#allocation7], %s240
        // Predicated region
        $region29: #{tpu_custom_call.1} parent=27 // pred_check
          %p242 = pneg %p47
        $region30: #{tpu_custom_call.1} parent=27 // pred_check_branch
          %244 = sbr.rel (%p242) target = $region32
        $region31: #{tpu_custom_call.1} parent=27 // pred_region
          %245 = dma.done %s238, 256
        $region32: #{tpu_custom_call.1} parent=27 // pred_fallthru
          _
        %s246 = sand.u32 %s60, 1
        %s247 = scalar_lea.sflag [#allocation11], %s246
        %s248 = sand.u32 %s60, 1
        %s249 = smul.addr %s248, 16
        %s250 = scalar_lea.vmem [#allocation10], %s249
        // Predicated region
        $region33: #{tpu_custom_call.1} parent=27 // pred_check
          %p251 = pneg %p73
        $region34: #{tpu_custom_call.1} parent=27 // pred_check_branch
          %253 = sbr.rel (%p251) target = $region36
        $region35: #{tpu_custom_call.1} parent=27 // pred_region
          %254 = dma.done %s247, 256
        $region36: #{tpu_custom_call.1} parent=27 // pred_fallthru
          _
        %s255 = sand.u32 %s34, 1
        %s256 = scalar_lea.sflag [#allocation8], %s255
        %s257 = sand.u32 %s34, 1
        %s258 = smul.addr %s257, 16
        %s259 = scalar_lea.vmem [#allocation7], %s258
        %p260 = pneg %p47
        %p261 = pneg %p44
        %s262 = sand.u32 %s60, 1
        %s263 = scalar_lea.sflag [#allocation11], %s262
        %s264 = sand.u32 %s60, 1
        %s265 = smul.addr %s264, 16
        %s266 = scalar_lea.vmem [#allocation10], %s265
        %p267 = pneg %p73
        %p268 = pneg %p70
        %p269 = pneg %p94
        %p270 = pneg %p91
        %p271 = pneg %p115
        %p272 = pneg %p112
        %p273 = pneg %p136
        %p274 = pneg %p133
        %p275 = pneg %p157
        %p276 = pneg %p154
        %s277 = smul.u32 2, %s26
        %s278 = ssub.s32 5, %s277
        %p279 = scmp.lt.s32.totalorder %s278, 2
        %s280 = scalar_select %p279, %s278, 2
        %s281 = smul.u32 128, %s280
        %s282 = smul.u32 2, %s26
        %s283 = ssub.s32 5, %s282
        %p284 = scmp.lt.s32.totalorder %s283, 2
        %s285 = scalar_select %p284, %s283, 2
        %s286 = smul.u32 128, %s285
        %p287 = scmp.eq.s32.totalorder %s26, 0
        // Predicated region
        $region37: #{tpu_custom_call.1} parent=27 // pred_check
          %p288 = pneg %p287
        $region38: #{tpu_custom_call.1} parent=27 // pred_check_branch
          %290 = sbr.rel (%p288) target = $region40
        $region39: #{tpu_custom_call.1} parent=27 // pred_region
          %291 = vst [vmem:[#allocation2] sm:$0x1] 0.0
          %292 = vst [vmem:[#allocation3] sm:$0x1] 0.0
          %293 = vst [vmem:[#allocation4] sm:$0x1] 0.0
          %294 = vst [vmem:[#allocation5] sm:$0x1] 0.0
          %vm295 = vcmask 0
          %296 = vst.msk [vmem:[#allocation6] sm:$0x1] %vm295, 0.0
        $region40: #{tpu_custom_call.1} parent=27 // pred_fallthru
          _
        %v297 = vlaneseq
        %v298 = vshrl.u32 %v297, 7
        %v299 = vadd.s32 %v298, 8
        %s300 = smul.u32 %s26, 16
        %v301 = vstv %s300
        %v302 = vadd.s32 %v298, %v301
        %v303 = vadd.s32 %v299, %v301
        %vm304 = vcmp.lt.s32.totalorder %v302, 40
        %vm305 = vcmp.lt.s32.totalorder %v303, 40
        %v306 = vld [vmem:[%s241] sm:$0xff]
        %v307 = vld [vmem:[%s241 + $0x8] sm:$0xff]
        %v308 = vld [vmem:[%s250] sm:$0xff]
        %v309 = vld [vmem:[%s250 + $0x8] sm:$0xff]
        %v310 = vmul.f32 %v306, %v306
        %v311 = vmul.f32 %v307, %v307
        %312 = vadd.xlane.f32.xlu0 %v310
        %v313 = vpop.xlane.xlu0 %312
        %314 = vadd.xlane.f32.xlu0 %v311
        %v315 = vpop.xlane.xlu0 %314
        %v316 = vrsqrt.pop %v313
        %v317 = vmul.f32 %v313, %v316
        %vm318 = vcmp.eq.f32.partialorder %v313, inf
        %v319 = vsel %vm318, %v313, %v317
        %vm320 = vcmp.eq.f32.partialorder %v313, 0.0
        %v321 = vand.u32 %v313, 2147483648
        %v322 = vsel %vm320, %v321, %v319
        %v323 = vrsqrt.pop %v315
        %v324 = vmul.f32 %v315, %v323
        %vm325 = vcmp.eq.f32.partialorder %v315, inf
        %v326 = vsel %vm325, %v315, %v324
        %vm327 = vcmp.eq.f32.partialorder %v315, 0.0
        %v328 = vand.u32 %v315, 2147483648
        %v329 = vsel %vm327, %v328, %v326
        %v330 = vmax.f32 %v322, 1e-12
        %v331 = vmax.f32 %v329, 1e-12
        %v332 = vrcp.pop %v330
        %v333 = vrcp.pop %v331
        %v334 = vmul.f32 %v306, %v332
        %v335 = vmul.f32 %v307, %v333
        %v336 = vsel %vm304, 1, 0
        %v337 = vsel %vm305, 1, 0
        %vm338 = vcmp.eq.s32.totalorder %v336, 1
        %vm339 = vcmp.eq.s32.totalorder %v337, 1
        %v340 = vsel %vm338, %v334, 0.0
        %v341 = vsel %vm339, %v335, 0.0
        %v342 = vmul.f32 %v308, %v308
        %v343 = vmul.f32 %v309, %v309
        %344 = vadd.xlane.f32.xlu0 %v342
        %v345 = vpop.xlane.xlu0 %344
        %346 = vadd.xlane.f32.xlu0 %v343
        %v347 = vpop.xlane.xlu0 %346
        %v348 = vrsqrt.pop %v345
        %v349 = vmul.f32 %v345, %v348
        %vm350 = vcmp.eq.f32.partialorder %v345, inf
        %v351 = vsel %vm350, %v345, %v349
        %vm352 = vcmp.eq.f32.partialorder %v345, 0.0
        %v353 = vand.u32 %v345, 2147483648
        %v354 = vsel %vm352, %v353, %v351
        %v355 = vrsqrt.pop %v347
        %v356 = vmul.f32 %v347, %v355
        %vm357 = vcmp.eq.f32.partialorder %v347, inf
        %v358 = vsel %vm357, %v347, %v356
        %vm359 = vcmp.eq.f32.partialorder %v347, 0.0
        %v360 = vand.u32 %v347, 2147483648
        %v361 = vsel %vm359, %v360, %v358
        %v362 = vmax.f32 %v354, 1e-12
        %v363 = vmax.f32 %v361, 1e-12
        %v364 = vrcp.pop %v362
        %v365 = vrcp.pop %v363
        %v366 = vmul.f32 %v308, %v364
        %v367 = vmul.f32 %v309, %v365
        %v368 = vsel %vm338, %v366, 0.0
        %v369 = vsel %vm339, %v367, 0.0
        %v370 = vld [vmem:[#allocation2] sm:$0x1]
        %v371 = vadd.f32 %v340, %v341
        %v372 = vrot.slane %v371, 4
        %v373 = vadd.f32 %v371, %v372
        %v374 = vrot.slane %v373, 2
        %v375 = vadd.f32 %v373, %v374
        %v376 = vrot.slane %v375, 1
        %v377 = vadd.f32 %v375, %v376
        %v378 = vadd.f32 %v370, %v377
        %379 = vst [vmem:[#allocation2] sm:$0x1] %v378
        %v380 = vld [vmem:[#allocation3] sm:$0x1]
        %v381 = vmul.f32 %v340, %v340
        %v382 = vmul.f32 %v341, %v341
        %v383 = vadd.f32 %v381, %v382
        %v384 = vrot.slane %v383, 4
        %v385 = vadd.f32 %v383, %v384
        %v386 = vrot.slane %v385, 2
        %v387 = vadd.f32 %v385, %v386
        %v388 = vrot.slane %v387, 1
        %v389 = vadd.f32 %v387, %v388
        %v390 = vadd.f32 %v380, %v389
        %391 = vst [vmem:[#allocation3] sm:$0x1] %v390
        %v392 = vld [vmem:[#allocation4] sm:$0x1]
        %v393 = vadd.f32 %v368, %v369
        %v394 = vrot.slane %v393, 4
        %v395 = vadd.f32 %v393, %v394
        %v396 = vrot.slane %v395, 2
        %v397 = vadd.f32 %v395, %v396
        %v398 = vrot.slane %v397, 1
        %v399 = vadd.f32 %v397, %v398
        %v400 = vadd.f32 %v392, %v399
        %401 = vst [vmem:[#allocation4] sm:$0x1] %v400
        %v402 = vld [vmem:[#allocation5] sm:$0x1]
        %v403 = vmul.f32 %v368, %v368
        %v404 = vmul.f32 %v369, %v369
        %v405 = vadd.f32 %v403, %v404
        %v406 = vrot.slane %v405, 4
        %v407 = vadd.f32 %v405, %v406
        %v408 = vrot.slane %v407, 2
        %v409 = vadd.f32 %v407, %v408
        %v410 = vrot.slane %v409, 1
        %v411 = vadd.f32 %v409, %v410
        %v412 = vadd.f32 %v402, %v411
        %413 = vst [vmem:[#allocation5] sm:$0x1] %v412
        %v414 = vmul.f32 %v340, %v368
        %v415 = vmul.f32 %v341, %v369
        %416 = vadd.xlane.f32.xlu0 %v414
        %v417 = vpop.xlane.xlu0 %416
        %418 = vadd.xlane.f32.xlu0 %v415
        %v419 = vpop.xlane.xlu0 %418
        %v420 = vld [vmem:[#allocation6] sm:$0x1]
        %v421 = vadd.f32 %v417, %v419
        %v422 = vrot.slane %v421, 4
        %v423 = vadd.f32 %v421, %v422
        %v424 = vrot.slane %v423, 2
        %v425 = vadd.f32 %v423, %v424
        %v426 = vrot.slane %v425, 1
        %v427 = vadd.f32 %v425, %v426
        %v428 = vadd.f32 %v420, %v427
        %vm429 = vcmask 0
        %430 = vst.msk [vmem:[#allocation6] sm:$0x1] %vm429, %v428
        %p431 = scmp.eq.s32.totalorder %s26, 2
        // Predicated region
        $region41: #{tpu_custom_call.1} parent=27 // pred_check
          %p432 = pneg %p431
        $region42: #{tpu_custom_call.1} parent=27 // pred_check_branch
          %434 = sbr.rel (%p432) target = $region44
        $region43: #{tpu_custom_call.1} parent=27 // pred_region
          %v435 = vld [vmem:[#allocation6] sm:$0x1]
          %v436 = vmul.f32 %v435, 2.0
          %v437 = vsub.f32 80.0, %v436
          %438 = vst.msk [vmem:[#allocation12] sm:$0x1] %vm429, %v437
          %v439 = vld [vmem:[#allocation2] sm:$0x1]
          %v440 = vld [vmem:[#allocation3] sm:$0x1]
          %v441 = vrcp.pop 39.0
          %v442 = vmul.f32 %v440, %v441
          %v443 = vmul.f32 %v439, %v439
          %v444 = vrcp.pop 1560.0
          %v445 = vmul.f32 %v443, %v444
          %v446 = vsub.f32 %v442, %v445
          %v447 = vadd.f32 %v446, 1e-06
          %v448 = vrsqrt.pop %v447
          %v449 = vmul.f32 %v447, %v448
          %vm450 = vcmp.eq.f32.partialorder %v447, inf
          %v451 = vsel %vm450, %v447, %v449
          %vm452 = vcmp.eq.f32.partialorder %v447, 0.0
          %v453 = vand.u32 %v447, 2147483648
          %v454 = vsel %vm452, %v453, %v451
          %v455 = vsub.f32 1.0, %v454
          %v456 = vmax.f32 %v455, 0.0
          %vm457 = vcmask 1040384
          %v458 = vsel %vm457, %v456, 0.0
          %459 = vadd.xlane.f32.xlu0 %v458
          %v460 = vpop.xlane.xlu0 %459
          %v461 = vrcp.pop 128.0
          %v462 = vmul.f32 %v460, %v461
          %463 = vst.msk [vmem:[#allocation13] sm:$0x1] %vm429, %v462
          %v464 = vsel %vm457, %v454, 0.0
          %465 = vadd.xlane.f32.xlu0 %v464
          %v466 = vpop.xlane.xlu0 %465
          %v467 = vmul.f32 %v466, %v461
          %468 = vst.msk [vmem:[#allocation15] sm:$0x1] %vm429, %v467
          %v469 = vld [vmem:[#allocation4] sm:$0x1]
          %v470 = vld [vmem:[#allocation5] sm:$0x1]
          %v471 = vmul.f32 %v470, %v441
          %v472 = vmul.f32 %v469, %v469
          %v473 = vmul.f32 %v472, %v444
          %v474 = vsub.f32 %v471, %v473
          %v475 = vadd.f32 %v474, 1e-06
          %v476 = vrsqrt.pop %v475
          %v477 = vmul.f32 %v475, %v476
          %vm478 = vcmp.eq.f32.partialorder %v475, inf
          %v479 = vsel %vm478, %v475, %v477
          %vm480 = vcmp.eq.f32.partialorder %v475, 0.0
          %v481 = vand.u32 %v475, 2147483648
          %v482 = vsel %vm480, %v481, %v479
          %v483 = vsel %vm457, %v482, 0.0
          %484 = vadd.xlane.f32.xlu0 %v483
          %v485 = vpop.xlane.xlu0 %484
          %v486 = vmul.f32 %v485, %v461
          %487 = vst.msk [vmem:[#allocation16] sm:$0x1] %vm429, %v486
        $region44: #{tpu_custom_call.1} parent=27 // pred_fallthru
          _
        // Predicated region
        $region45: #{tpu_custom_call.1} parent=27 // pred_check
          %p488 = pneg %p91
        $region46: #{tpu_custom_call.1} parent=27 // pred_check_branch
          %490 = sbr.rel (%p488) target = $region48
        $region47: #{tpu_custom_call.1} parent=27 // pred_region
          %s492 = ssub.s32 16, 16
          %493 = vsyncadd [#allocation9], %s492
          %s495 = sshll.u32 [#allocation12], 4
          %s496 = int_to_ptr.vmem [resolvable:$true] %s495
          %498 = dma.vmem_to_hbm [thread:$0]  %s496, 16, %s2, [#allocation9]
        $region48: #{tpu_custom_call.1} parent=27 // pred_fallthru
          _
        // Predicated region
        $region49: #{tpu_custom_call.1} parent=27 // pred_check
          %p499 = pneg %p112
        $region50: #{tpu_custom_call.1} parent=27 // pred_check_branch
          %501 = sbr.rel (%p499) target = $region52
        $region51: #{tpu_custom_call.1} parent=27 // pred_region
          %s503 = ssub.s32 16, 16
          %504 = vsyncadd [#allocation14], %s503
          %s506 = sshll.u32 [#allocation13], 4
          %s507 = int_to_ptr.vmem [resolvable:$true] %s506
          %509 = dma.vmem_to_hbm [thread:$0]  %s507, 16, %s3, [#allocation14]
        $region52: #{tpu_custom_call.1} parent=27 // pred_fallthru
          _
        // Predicated region
        $region53: #{tpu_custom_call.1} parent=27 // pred_check
          %p510 = pneg %p133
        $region54: #{tpu_custom_call.1} parent=27 // pred_check_branch
          %512 = sbr.rel (%p510) target = $region56
        $region55: #{tpu_custom_call.1} parent=27 // pred_region
          %s514 = ssub.s32 16, 16
          %515 = vsyncadd [#allocation14], %s514
          %s517 = sshll.u32 [#allocation15], 4
          %s518 = int_to_ptr.vmem [resolvable:$true] %s517
          %520 = dma.vmem_to_hbm [thread:$0]  %s518, 16, %s4, [#allocation14]
        $region56: #{tpu_custom_call.1} parent=27 // pred_fallthru
          _
        // Predicated region
        $region57: #{tpu_custom_call.1} parent=27 // pred_check
          %p521 = pneg %p154
        $region58: #{tpu_custom_call.1} parent=27 // pred_check_branch
          %523 = sbr.rel (%p521) target = $region60
        $region59: #{tpu_custom_call.1} parent=27 // pred_region
          %s525 = ssub.s32 16, 16
          %526 = vsyncadd [#allocation17], %s525
          %s528 = sshll.u32 [#allocation16], 4
          %s529 = int_to_ptr.vmem [resolvable:$true] %s528
          %531 = dma.vmem_to_hbm [thread:$0]  %s529, 16, %s5, [#allocation17]
        $region60: #{tpu_custom_call.1} parent=27 // pred_fallthru
          _
        // Predicated region
        $region61: #{tpu_custom_call.1} parent=27 // pred_check
          %p532 = pneg %p91
        $region62: #{tpu_custom_call.1} parent=27 // pred_check_branch
          %534 = sbr.rel (%p532) target = $region64
        $region63: #{tpu_custom_call.1} parent=27 // pred_region
          %535 = dma.done [#allocation9], 16
        $region64: #{tpu_custom_call.1} parent=27 // pred_fallthru
          _
        // Predicated region
        $region65: #{tpu_custom_call.1} parent=27 // pred_check
          %p536 = pneg %p112
        $region66: #{tpu_custom_call.1} parent=27 // pred_check_branch
          %538 = sbr.rel (%p536) target = $region68
        $region67: #{tpu_custom_call.1} parent=27 // pred_region
          %539 = dma.done [#allocation14], 16
        $region68: #{tpu_custom_call.1} parent=27 // pred_fallthru
          _
        // Predicated region
        $region69: #{tpu_custom_call.1} parent=27 // pred_check
          %p540 = pneg %p133
        $region70: #{tpu_custom_call.1} parent=27 // pred_check_branch
          %542 = sbr.rel (%p540) target = $region72
        $region71: #{tpu_custom_call.1} parent=27 // pred_region
          %543 = dma.done [#allocation14], 16
        $region72: #{tpu_custom_call.1} parent=27 // pred_fallthru
          _
        // Predicated region
        $region73: #{tpu_custom_call.1} parent=27 // pred_check
          %p544 = pneg %p154
        $region74: #{tpu_custom_call.1} parent=27 // pred_check_branch
          %546 = sbr.rel (%p544) target = $region76
        $region75: #{tpu_custom_call.1} parent=27 // pred_region
          %547 = dma.done [#allocation17], 16
        $region76: #{tpu_custom_call.1} parent=27 // pred_fallthru
          _
      $region28: #{tpu_custom_call.1} parent=5 // pred_fallthru
        _
      %p548 = scmp.le.s32.totalorder 2, %s21
      // Predicated region
      $region77: #{tpu_custom_call.1} parent=5 // pred_check
        %p549 = pneg %p548
      $region78: #{tpu_custom_call.1} parent=5 // pred_check_branch
        %551 = sbr.rel (%p549) target = $region80
      $region79: #{tpu_custom_call.1} parent=5 // pred_region
        %s552 = ssub.s32 %s21, 2
      $region80: #{tpu_custom_call.1} parent=5 // pred_fallthru
        _
    $region6: #{tpu_custom_call.1} parent=1 // loop_footer
      %s25 = sadd.s32 1, %s21
    $region7: #{tpu_custom_call.1} parent=1 // loop_footer_branch
      %20 = sbr.rel target = $region3
    $region8: #{tpu_custom_call.1} parent=1 // loop_exit
      _
    %553 = vsyncpa [#allocation8], 1
    %s554 = scalar_lea.sflag [#allocation8], 1
    %555 = vsyncpa %s554, 1
    %556 = vsyncpa [#allocation11], 1
    %s557 = scalar_lea.sflag [#allocation11], 1
    %558 = vsyncpa %s557, 1
    %559 = vsyncpa [#allocation9], 1
    %s560 = scalar_lea.sflag [#allocation9], 1
    %561 = vsyncpa %s560, 1
    %562 = vsyncpa [#allocation14], 1
    %563 = vsyncpa [#allocation17], 1

</llo_original>
